<compile_context>
chip_gen: v6e
topology: v6e:2x2x1
jax: 0.10.0
libtpu: 0.0.40
codegen_flags: <defaults>
</compile_context>

<pallas_src>
import jax
import jax.numpy as jnp
from jax.experimental import pallas as pl
from jax.experimental.pallas import tpu as pltpu


# ----------------------------------------------------------------------------
# small helpers
# ----------------------------------------------------------------------------
def _round_up(x, m):
    return ((x + m - 1) // m) * m


def _cdiv(a, b):
    return -(-a // b)


def _vmem_capacity_bytes():
    """Per-TensorCore VMEM capacity; falls back to the v7x value (64 MiB)."""
    try:
        cap = int(pltpu.get_tpu_info().vmem_capacity_bytes)
        if cap > 0:
            return cap
    except Exception:
        pass
    return 64 * 1024 * 1024


def _pad_lane(a, target):
    """Zero-pad the last dim to `target` lanes (no-op when already aligned)."""
    pad = target - a.shape[-1]
    if pad == 0:
        return a
    return jnp.pad(a, [(0, 0)] * (a.ndim - 1) + [(0, pad)])


def _pick_tile_rows(m_rows, per_row_bytes, fixed_bytes, vmem_cap):
    """Rows per grid step, sized from the chip's VMEM.

    per_row_bytes must include double-buffered input/output streams AND f32
    intermediates; fixed_bytes the (double-buffered) resident weights/biases.
    """
    budget = max(vmem_cap * 3 // 4 - fixed_bytes, 4 << 20)
    tm = budget // max(per_row_bytes, 1)
    tm = min(tm, 512)                          # roofline plateau; caps f32 scratch (v5e)
    tm = min(tm, _round_up(m_rows, 8))
    tm = max(8, (tm // 8) * 8)
    # v7x has 2 TensorCores/chip: make the "parallel" row axis have >=2 steps.
    while tm > 8 and _cdiv(m_rows, tm) < 2:
        tm = max(8, ((tm // 2) // 8) * 8)
    return int(tm)


def _vmem_limit(per_row_bytes, tm, fixed_bytes, vmem_cap):
    need = fixed_bytes + per_row_bytes * tm + (4 << 20)
    return int(min(vmem_cap, max(need, 32 << 20)))


# ----------------------------------------------------------------------------
# Pallas kernels
# ----------------------------------------------------------------------------
def _low_rank3_kernel(x1_ref, x2_ref, x3_ref, w_ref, b_ref, o_ref):
    """low_rank_layer applied to three row-tiles sharing the resident weight."""
    w = w_ref[...]
    b = b_ref[...]
    for t, x_ref in enumerate((x1_ref, x2_ref, x3_ref)):
        y = jnp.dot(x_ref[...], w, preferred_element_type=jnp.float32) + b
        o_ref[t] = y.astype(o_ref.dtype)


def _refine_kernel(lr_ref, id_ref, img_ref, txt_ref,
                   w1_ref, b1_ref,
                   wdv_ref, bdv_ref, wuv_ref, buv_ref,
                   wdt_ref, bdt_ref, wut_ref, but_ref,
                   o_ref):
    """Fused epilogue for one row-tile:
         global_* = low_rank_layer1(transformer_out_*)      (3 matmuls)
         gv_id    = gate_v(id);  gv_gid = gate_v(global_id);  gt_gid = gate_t(global_id)
         out      = id + (img+txt)*gv_id + global_img*gv_gid + global_txt*gt_gid
       Everything stays in VMEM/f32; only `out` is written back to HBM.
    """
    f32 = jnp.float32
    w1 = w1_ref[...]
    b1 = b1_ref[...]

    gid = jnp.dot(lr_ref[0], w1, preferred_element_type=f32) + b1
    gimg = jnp.dot(lr_ref[1], w1, preferred_element_type=f32) + b1
    gtxt = jnp.dot(lr_ref[2], w1, preferred_element_type=f32) + b1

    wdtype = wdv_ref.dtype

    def gate(x, wd_ref, bd_ref, wu_ref, bu_ref):
        h = jnp.dot(x.astype(wdtype), wd_ref[...], preferred_element_type=f32) + bd_ref[...]
        h = jax.nn.sigmoid(h)                              # EUP, kept in f32
        return jnp.dot(h.astype(wdtype), wu_ref[...], preferred_element_type=f32) + bu_ref[...]

    idf = id_ref[...]
    gv_id = gate(idf, wdv_ref, bdv_ref, wuv_ref, buv_ref)
    gv_gid = gate(gid, wdv_ref, bdv_ref, wuv_ref, buv_ref)
    gt_gid = gate(gid, wdt_ref, bdt_ref, wut_ref, but_ref)

    img = img_ref[...].astype(f32)
    txt = txt_ref[...].astype(f32)
    out = idf.astype(f32) + (img + txt) * gv_id + gimg * gv_gid + gtxt * gt_gid
    o_ref[...] = out.astype(o_ref.dtype)


# ----------------------------------------------------------------------------
# parameter preparation (one-time: transpose + lane padding hoisted out of the
# per-call path; padding is a no-op for dims that are already 128-aligned)
# ----------------------------------------------------------------------------
def prepare_linear_params(w, b):
    """torch nn.Linear layout: w [out_f, in_f], b [out_f]."""
    out_f, in_f = w.shape
    in_p, out_p = _round_up(in_f, 128), _round_up(out_f, 128)
    w_t = jnp.zeros((in_p, out_p), w.dtype).at[:in_f, :out_f].set(jnp.transpose(w))
    b_p = jnp.zeros((1, out_p), b.dtype).at[0, :out_f].set(b)
    return {"w": w_t, "b": b_p, "in_f": in_f, "out_f": out_f}


def prepare_gate_params(w_down, b_down, w_up, b_up):
    """Gate = Linear(H->G) -> sigmoid -> Linear(G->H); torch layouts."""
    g, h = w_down.shape
    hp, gp = _round_up(h, 128), _round_up(g, 128)
    wd = jnp.zeros((hp, gp), w_down.dtype).at[:h, :g].set(jnp.transpose(w_down))
    bd = jnp.zeros((1, gp), b_down.dtype).at[0, :g].set(b_down)
    wu = jnp.zeros((gp, hp), w_up.dtype).at[:g, :h].set(jnp.transpose(w_up))
    bu = jnp.zeros((1, hp), b_up.dtype).at[0, :h].set(b_up)
    # zero-padding is exact: padded gate-hidden cols give sigmoid(0)=0.5 but multiply
    # zero rows of wu; padded input cols multiply zero rows of wd.
    return {"wd": wd, "bd": bd, "wu": wu, "bu": bu, "h": h, "g": g}


# ----------------------------------------------------------------------------
# Pallas wrappers
# ----------------------------------------------------------------------------
def low_rank3_forward(x1, x2, x3, prep):
    """low_rank_layer on three equally-shaped [..., H] tensors in ONE pallas_call.
    Returns a stacked (3, rows, d) array (padded lanes sliced off)."""
    w, b = prep["w"], prep["b"]
    in_f, out_f = prep["in_f"], prep["out_f"]
    in_p, out_p = w.shape

    xs = [_pad_lane(t.reshape(-1, in_f), in_p) for t in (x1, x2, x3)]
    m = xs[0].shape[0]

    item = jnp.dtype(x1.dtype).itemsize
    cap = _vmem_capacity_bytes()
    per_row = (2 * item * 3 * in_p          # 3 input streams, double-buffered
               + 2 * item * 3 * out_p       # stacked output block, double-buffered
               + 4 * 3 * out_p)             # f32 accumulators
    fixed = 2 * item * (in_p * out_p + out_p)
    tm = _pick_tile_rows(m, per_row, fixed, cap)

    cost = pl.CostEstimate(
        flops=3 * 2 * m * in_f * out_f,
        transcendentals=0,
        bytes_accessed=item * (3 * m * (in_f + out_f) + in_f * out_f + out_f))

    out = pl.pallas_call(
        _low_rank3_kernel,
        out_shape=jax.ShapeDtypeStruct((3, m, out_p), x1.dtype),
        grid=(_cdiv(m, tm),),
        in_specs=[
            pl.BlockSpec((tm, in_p), lambda i: (i, 0)),
            pl.BlockSpec((tm, in_p), lambda i: (i, 0)),
            pl.BlockSpec((tm, in_p), lambda i: (i, 0)),
            pl.BlockSpec((in_p, out_p), lambda i: (0, 0)),   # resident weight
            pl.BlockSpec((1, out_p), lambda i: (0, 0)),      # resident bias
        ],
        out_specs=pl.BlockSpec((3, tm, out_p), lambda i: (0, i, 0)),
        compiler_params=pltpu.CompilerParams(
            dimension_semantics=("parallel",),
            vmem_limit_bytes=_vmem_limit(per_row, tm, fixed, cap)),
        cost_estimate=cost,
    )(*xs, w, b)

    if out_p != out_f:
        out = out[:, :, :out_f]
    return out


def refine_forward(lr_stack, id_feat, img_feat, txt_feat, lr1_prep, gate_v, gate_t):
    """Fused low_rank_layer1 + gates + refinement + final sum (one pallas_call)."""
    w1, b1 = lr1_prep["w"], lr1_prep["b"]
    d_in, h_out = lr1_prep["in_f"], lr1_prep["out_f"]
    d_p, h_p = w1.shape
    g_p = gate_v["wd"].shape[1]
    lead = id_feat.shape[:-1]

    idp = _pad_lane(id_feat.reshape(-1, h_out), h_p)
    imgp = _pad_lane(img_feat.reshape(-1, h_out), h_p)
    txtp = _pad_lane(txt_feat.reshape(-1, h_out), h_p)
    m = idp.shape[0]
    lrp = _pad_lane(lr_stack.reshape(3, m, d_in), d_p)

    item = jnp.dtype(id_feat.dtype).itemsize
    cap = _vmem_capacity_bytes()
    per_row = (2 * item * (3 * d_p + 3 * h_p)   # streamed inputs, double-buffered
               + 2 * item * h_p                 # output, double-buffered
               + 4 * (6 * h_p + 3 * g_p))       # f32 globals + gate outputs + gate hidden
    fixed = 2 * item * (d_p * h_p + h_p + 2 * (2 * h_p * g_p + g_p + h_p))
    tm = _pick_tile_rows(m, per_row, fixed, cap)

    g_true = gate_v["g"]
    cost = pl.CostEstimate(
        flops=2 * m * (3 * d_in * h_out + 6 * h_out * g_true) + 8 * m * h_out,
        transcendentals=3 * m * g_true,
        bytes_accessed=item * (m * (3 * d_in + 4 * h_out)
                               + d_in * h_out + h_out
                               + 2 * (2 * h_out * g_true + g_true + h_out)))

    out = pl.pallas_call(
        _refine_kernel,
        out_shape=jax.ShapeDtypeStruct((m, h_p), id_feat.dtype),
        grid=(_cdiv(m, tm),),
        in_specs=[
            pl.BlockSpec((3, tm, d_p), lambda i: (0, i, 0)),   # stacked low-rank globals
            pl.BlockSpec((tm, h_p), lambda i: (i, 0)),         # id_feat
            pl.BlockSpec((tm, h_p), lambda i: (i, 0)),         # img_feat
            pl.BlockSpec((tm, h_p), lambda i: (i, 0)),         # txt_feat
            pl.BlockSpec((d_p, h_p), lambda i: (0, 0)),        # low_rank_layer1 W (resident)
            pl.BlockSpec((1, h_p), lambda i: (0, 0)),
            pl.BlockSpec((h_p, g_p), lambda i: (0, 0)),        # gate_v down
            pl.BlockSpec((1, g_p), lambda i: (0, 0)),
            pl.BlockSpec((g_p, h_p), lambda i: (0, 0)),        # gate_v up
            pl.BlockSpec((1, h_p), lambda i: (0, 0)),
            pl.BlockSpec((h_p, g_p), lambda i: (0, 0)),        # gate_t down
            pl.BlockSpec((1, g_p), lambda i: (0, 0)),
            pl.BlockSpec((g_p, h_p), lambda i: (0, 0)),        # gate_t up
            pl.BlockSpec((1, h_p), lambda i: (0, 0)),
        ],
        out_specs=pl.BlockSpec((tm, h_p), lambda i: (i, 0)),
        compiler_params=pltpu.CompilerParams(
            dimension_semantics=("parallel",),
            vmem_limit_bytes=_vmem_limit(per_row, tm, fixed, cap)),
        cost_estimate=cost,
    )(lrp, idp, imgp, txtp, w1, b1,
      gate_v["wd"], gate_v["bd"], gate_v["wu"], gate_v["bu"],
      gate_t["wd"], gate_t["bd"], gate_t["wu"], gate_t["bu"])

    if h_p != h_out:
        out = out[:, :h_out]
    return out.reshape(lead + (h_out,))


# ----------------------------------------------------------------------------
# TransformerEncoderLayer (plain JAX, post-norm, relu, eval mode)
# TODO(synk): the TransformerEncoderLayer (self-attention, layer norms, FFN) runs in
#             plain JAX/XLA at d_model = hidden/low_rank; no fused Pallas attention kernel.
# ----------------------------------------------------------------------------
def _layer_norm(x, w, b, eps=1e-5):
    mu = jnp.mean(x, axis=-1, keepdims=True)
    var = jnp.var(x, axis=-1, keepdims=True)
    return (x - mu) * jax.lax.rsqrt(var + eps) * w + b


def transformer_encoder_layer(x, p, nhead):
    b, s, d = x.shape
    hd = d // nhead
    qkv = x @ p["in_proj_w"].T + p["in_proj_b"]
    q, k, v = jnp.split(qkv, 3, axis=-1)

    def split_heads(t):
        return t.reshape(b, s, nhead, hd).transpose(0, 2, 1, 3)

    q, k, v = split_heads(q), split_heads(k), split_heads(v)
    scores = jnp.einsum("bhqd,bhkd->bhqk", q, k) / jnp.sqrt(jnp.asarray(hd, x.dtype))
    attn = jax.nn.softmax(scores, axis=-1)
    ctx = jnp.einsum("bhqk,bhkd->bhqd", attn, v).transpose(0, 2, 1, 3).reshape(b, s, d)
    attn_out = ctx @ p["out_proj_w"].T + p["out_proj_b"]
    x = _layer_norm(x + attn_out, p["ln1_w"], p["ln1_b"])
    ff = jnp.maximum(x @ p["lin1_w"].T + p["lin1_b"], 0.0) @ p["lin2_w"].T + p["lin2_b"]
    x = _layer_norm(x + ff, p["ln2_w"], p["ln2_b"])
    return x


# ----------------------------------------------------------------------------
# HierarchicalAttentionLayer forward (Pallas path)
# ----------------------------------------------------------------------------
def hierarchical_attention_forward(params, id_feat, img_feat, txt_feat):
    b, s, _ = id_feat.shape
    d = params["low_rank_prep"]["out_f"]

    # low_rank_layer on id/img/txt in one call -> (3, B*S, d)
    lr = low_rank3_forward(id_feat, img_feat, txt_feat, params["low_rank_prep"])

    # shared TransformerEncoderLayer, batched over the 3 feature streams
    henc = transformer_encoder_layer(lr.reshape(3 * b, s, d),
                                     params["transformer"], params["nhead"])

    # fused: low_rank_layer1 + gate_v/gate_t + elementwise refinement + final sum
    return refine_forward(henc.reshape(3, b * s, d), id_feat, img_feat, txt_feat,
                          params["low_rank1_prep"], params["gate_v"], params["gate_t"])


# ----------------------------------------------------------------------------
# pure-JAX reference (follows the torch forward ordering exactly)
# ----------------------------------------------------------------------------
def _linear_ref(x, lp):
    i, o = lp["in_f"], lp["out_f"]
    return x @ lp["w"][:i, :o] + lp["b"][0, :o]


def _gate_ref(x, gp):
    h, g = gp["h"], gp["g"]
    hid = jax.nn.sigmoid(x @ gp["wd"][:h, :g] + gp["bd"][0, :g])
    return hid @ gp["wu"][:g, :h] + gp["bu"][0, :h]


def hierarchical_attention_forward_ref(params, id_feat, img_feat, txt_feat):
    def ge(x):
        h = _linear_ref(x, params["low_rank_prep"])
        h = transformer_encoder_layer(h, params["transformer"], params["nhead"])
        return _linear_ref(h, params["low_rank1_prep"])

    global_id, global_img, global_txt = ge(id_feat), ge(img_feat), ge(txt_feat)
    gv_id = _gate_ref(id_feat, params["gate_v"])
    gv_gid = _gate_ref(global_id, params["gate_v"])
    gt_gid = _gate_ref(global_id, params["gate_t"])
    img_refined = img_feat * gv_id + global_img * gv_gid
    txt_refined = txt_feat * gv_id + global_txt * gt_gid
    return id_feat + img_refined + txt_refined


# ----------------------------------------------------------------------------
# deterministic init (torch nn.Linear style: uniform +/- 1/sqrt(fan_in))
# ----------------------------------------------------------------------------
def _linear_init(key, out_f, in_f, dtype):
    bnd = 1.0 / (in_f ** 0.5)
    k1, k2 = jax.random.split(key)
    w = jax.random.uniform(k1, (out_f, in_f), dtype, -bnd, bnd)
    b = jax.random.uniform(k2, (out_f,), dtype, -bnd, bnd)
    return w, b


def init_transformer_params(key, d_model, dim_ff, dtype=jnp.float32):
    ks = jax.random.split(key, 4)
    in_w, in_b = _linear_init(ks[0], 3 * d_model, d_model, dtype)
    out_w, out_b = _linear_init(ks[1], d_model, d_model, dtype)
    l1w, l1b = _linear_init(ks[2], dim_ff, d_model, dtype)
    l2w, l2b = _linear_init(ks[3], d_model, dim_ff, dtype)
    return {
        "in_proj_w": in_w, "in_proj_b": in_b,
        "out_proj_w": out_w, "out_proj_b": out_b,
        "lin1_w": l1w, "lin1_b": l1b, "lin2_w": l2w, "lin2_b": l2b,
        "ln1_w": jnp.ones((d_model,), dtype), "ln1_b": jnp.zeros((d_model,), dtype),
        "ln2_w": jnp.ones((d_model,), dtype), "ln2_b": jnp.zeros((d_model,), dtype),
    }


def init_params(key, hidden_size, low_rank, gate_low_rank, dtype=jnp.float32):
    d_model = hidden_size // low_rank
    gate_h = hidden_size // gate_low_rank
    k0, k1, k2, k3, k4 = jax.random.split(key, 5)

    w0, b0 = _linear_init(k0, d_model, hidden_size, dtype)     # low_rank_layer
    w1, b1 = _linear_init(k1, hidden_size, d_model, dtype)     # low_rank_layer1

    def gate_init(kk):
        ka, kb = jax.random.split(kk)
        wd, bd = _linear_init(ka, gate_h, hidden_size, dtype)
        wu, bu = _linear_init(kb, hidden_size, gate_h, dtype)
        return prepare_gate_params(wd, bd, wu, bu)

    return {
        "nhead": 4,
        "low_rank_prep": prepare_linear_params(w0, b0),
        "low_rank1_prep": prepare_linear_params(w1, b1),
        "transformer": init_transformer_params(k2, d_model, d_model, dtype),
        "gate_v": gate_init(k3),
        "gate_t": gate_init(k4),
    }


if __name__ == "__main__":
    key = jax.random.PRNGKey(0)
    k_id, k_img, k_txt, k_p = jax.random.split(key, 4)

    batch, seq, hidden, low_rank, gate_low_rank = 2, 8, 32, 4, 4
    id_feat = jax.random.normal(k_id, (batch, seq, hidden), dtype=jnp.float32)
    img_feat = jax.random.normal(k_img, (batch, seq, hidden), dtype=jnp.float32)
    txt_feat = jax.random.normal(k_txt, (batch, seq, hidden), dtype=jnp.float32)

    params = init_params(k_p, hidden, low_rank, gate_low_rank)

    out = jax.block_until_ready(
        hierarchical_attention_forward(params, id_feat, img_feat, txt_feat))
    out_ref = jax.block_until_ready(
        hierarchical_attention_forward_ref(params, id_feat, img_feat, txt_feat))

    assert out.shape == id_feat.shape
    err = float(jnp.max(jnp.abs(out - out_ref)))
    assert jnp.allclose(out, out_ref, atol=2e-4, rtol=2e-4), f"max abs err {err}"

    print("KERNEL_OK")
</pallas_src>

<mosaic_0001>
module attributes {stable_mosaic.version = 11 : i64} {
  func.func @_low_rank3_kernel(%arg0: i32, %arg1: memref<8x128xf32, #tpu.memory_space<vmem>>, %arg2: memref<8x128xf32, #tpu.memory_space<vmem>>, %arg3: memref<8x128xf32, #tpu.memory_space<vmem>>, %arg4: memref<128x128xf32, #tpu.memory_space<vmem>>, %arg5: memref<1x128xf32, #tpu.memory_space<vmem>>, %arg6: memref<3x8x128xf32, #tpu.memory_space<vmem>>) attributes {dimension_semantics = [#tpu.dimension_semantics<parallel>], iteration_bounds = array<i64: 2>, scalar_prefetch = 0 : i64, scratch_operands = 0 : i64, tpu.core_type = #tpu.core_type<tc>, window_params = [{transform_indices = @transform_0, window_bounds = array<i64: 8, 128>}, {transform_indices = @transform_1, window_bounds = array<i64: 8, 128>}, {transform_indices = @transform_2, window_bounds = array<i64: 8, 128>}, {pipeline_mode = #tpu.pipeline_mode<synchronous>, transform_indices = @transform_3, window_bounds = array<i64: 128, 128>}, {pipeline_mode = #tpu.pipeline_mode<synchronous>, transform_indices = @transform_4, window_bounds = array<i64: 1, 128>}, {transform_indices = @transform_5, window_bounds = array<i64: 3, 8, 128>}]} {
    %c0 = arith.constant 0 : index
    %c0_0 = arith.constant 0 : index
    %0 = vector.load %arg4[%c0, %c0_0] : memref<128x128xf32, #tpu.memory_space<vmem>>, vector<128x128xf32>
    %c0_1 = arith.constant 0 : index
    %c0_2 = arith.constant 0 : index
    %1 = vector.load %arg5[%c0_1, %c0_2] : memref<1x128xf32, #tpu.memory_space<vmem>>, vector<1x128xf32>
    %c0_3 = arith.constant 0 : index
    %c0_4 = arith.constant 0 : index
    %2 = vector.load %arg1[%c0_3, %c0_4] : memref<8x128xf32, #tpu.memory_space<vmem>>, vector<8x128xf32>
    %cst = arith.constant dense<0.000000e+00> : vector<8x128xf32>
    %3 = tpu.matmul %2, %0, %cst {dimension_numbers = #tpu.dot_dimension_numbers<[1], [0], [0], [1], [0, 0, 1, 1], [], []>} : vector<8x128xf32>, vector<128x128xf32>, vector<8x128xf32> -> vector<8x128xf32>
    %4 = vector.broadcast %1 : vector<1x128xf32> to vector<8x128xf32>
    %5 = arith.addf %3, %4 : vector<8x128xf32>
    %c0_5 = arith.constant 0 : index
    %c0_6 = arith.constant 0 : index
    %c0_7 = arith.constant 0 : index
    %6 = vector.load %arg6[%c0_5, %c0_6, %c0_7] : memref<3x8x128xf32, #tpu.memory_space<vmem>>, vector<1x8x128xf32>
    %7 = vector.shape_cast %6 : vector<1x8x128xf32> to vector<8x128xf32>
    %8 = vector.shape_cast %5 : vector<8x128xf32> to vector<1x8x128xf32>
    tpu.vector_store %arg6[%c0_5, %c0_6, %c0_7], %8 {strides = array<i32>} : memref<3x8x128xf32, #tpu.memory_space<vmem>>, vector<1x8x128xf32>,
    %c0_8 = arith.constant 0 : index
    %c0_9 = arith.constant 0 : index
    %9 = vector.load %arg2[%c0_8, %c0_9] : memref<8x128xf32, #tpu.memory_space<vmem>>, vector<8x128xf32>
    %cst_10 = arith.constant dense<0.000000e+00> : vector<8x128xf32>
    %10 = tpu.matmul %9, %0, %cst_10 {dimension_numbers = #tpu.dot_dimension_numbers<[1], [0], [0], [1], [0, 0, 1, 1], [], []>} : vector<8x128xf32>, vector<128x128xf32>, vector<8x128xf32> -> vector<8x128xf32>
    %11 = vector.broadcast %1 : vector<1x128xf32> to vector<8x128xf32>
    %12 = arith.addf %10, %11 : vector<8x128xf32>
    %c1 = arith.constant 1 : index
    %c0_11 = arith.constant 0 : index
    %c0_12 = arith.constant 0 : index
    %13 = vector.load %arg6[%c1, %c0_11, %c0_12] : memref<3x8x128xf32, #tpu.memory_space<vmem>>, vector<1x8x128xf32>
    %14 = vector.shape_cast %13 : vector<1x8x128xf32> to vector<8x128xf32>
    %15 = vector.shape_cast %12 : vector<8x128xf32> to vector<1x8x128xf32>
    tpu.vector_store %arg6[%c1, %c0_11, %c0_12], %15 {strides = array<i32>} : memref<3x8x128xf32, #tpu.memory_space<vmem>>, vector<1x8x128xf32>,
    %c0_13 = arith.constant 0 : index
    %c0_14 = arith.constant 0 : index
    %16 = vector.load %arg3[%c0_13, %c0_14] : memref<8x128xf32, #tpu.memory_space<vmem>>, vector<8x128xf32>
    %cst_15 = arith.constant dense<0.000000e+00> : vector<8x128xf32>
    %17 = tpu.matmul %16, %0, %cst_15 {dimension_numbers = #tpu.dot_dimension_numbers<[1], [0], [0], [1], [0, 0, 1, 1], [], []>} : vector<8x128xf32>, vector<128x128xf32>, vector<8x128xf32> -> vector<8x128xf32>
    %18 = vector.broadcast %1 : vector<1x128xf32> to vector<8x128xf32>
    %19 = arith.addf %17, %18 : vector<8x128xf32>
    %c2 = arith.constant 2 : index
    %c0_16 = arith.constant 0 : index
    %c0_17 = arith.constant 0 : index
    %20 = vector.load %arg6[%c2, %c0_16, %c0_17] : memref<3x8x128xf32, #tpu.memory_space<vmem>>, vector<1x8x128xf32>
    %21 = vector.shape_cast %20 : vector<1x8x128xf32> to vector<8x128xf32>
    %22 = vector.shape_cast %19 : vector<8x128xf32> to vector<1x8x128xf32>
    tpu.vector_store %arg6[%c2, %c0_16, %c0_17], %22 {strides = array<i32>} : memref<3x8x128xf32, #tpu.memory_space<vmem>>, vector<1x8x128xf32>,
    return
  }
  func.func @transform_0(%arg0: i32) -> (i32, i32) {
    %c0_i32 = arith.constant 0 : i32
    %c0_i32_0 = arith.constant 0 : i32
    return %arg0, %c0_i32 : i32, i32
  }
  func.func @transform_1(%arg0: i32) -> (i32, i32) {
    %c0_i32 = arith.constant 0 : i32
    %c0_i32_0 = arith.constant 0 : i32
    return %arg0, %c0_i32 : i32, i32
  }
  func.func @transform_2(%arg0: i32) -> (i32, i32) {
    %c0_i32 = arith.constant 0 : i32
    %c0_i32_0 = arith.constant 0 : i32
    return %arg0, %c0_i32 : i32, i32
  }
  func.func @transform_3(%arg0: i32) -> (i32, i32) {
    %c0_i32 = arith.constant 0 : i32
    %c0_i32_0 = arith.constant 0 : i32
    %c0_i32_1 = arith.constant 0 : i32
    return %c0_i32, %c0_i32_0 : i32, i32
  }
  func.func @transform_4(%arg0: i32) -> (i32, i32) {
    %c0_i32 = arith.constant 0 : i32
    %c0_i32_0 = arith.constant 0 : i32
    %c0_i32_1 = arith.constant 0 : i32
    return %c0_i32, %c0_i32_0 : i32, i32
  }
  func.func @transform_5(%arg0: i32) -> (i32, i32, i32) {
    %c0_i32 = arith.constant 0 : i32
    %c0_i32_0 = arith.constant 0 : i32
    %c0_i32_1 = arith.constant 0 : i32
    return %c0_i32, %arg0, %c0_i32_0 : i32, i32, i32
  }
}

</mosaic_0001>

<llo_original>
// kernel: tpu_custom_call.1
$region0: #{tpu_custom_call.1}
  #allocation0 [shape = 'u32[]', space=smem, size = 0x4, offset = 0x4, fixed_abs, tag = 'smem constant byte address 0x4 - core index']
  #allocation1 [shape = 'u32[144,128]{1,0:T(1,128)}', space=vmem, size = 0x12000, scoped, tag = 'internal scratch']
  %s0 = inlined_call_operand.hbm [shape: f32[16,128], index: 0, kind: input, shape index: {}]
  %s1 = inlined_call_operand.hbm [shape: f32[16,128], index: 1, kind: input, shape index: {}]
  %s2 = inlined_call_operand.hbm [shape: f32[16,128], index: 2, kind: input, shape index: {}]
  %s3 = inlined_call_operand.hbm [shape: f32[128,128], index: 3, kind: input, shape index: {}]
  %s4 = inlined_call_operand.vmem [shape: f32[1,128], index: 4, kind: input, shape index: {}]
  %s5 = inlined_call_operand.hbm [shape: f32[3,16,128], index: 5, kind: output, shape index: {}]
  %s6 = sld [smem:[#allocation0]]
  $region69: #{tpu_custom_call.1} parent=0
    _
  %s8 = ssub.s32 1, %s6
  %s9 = scalar_select 0, %s8, %s6
  $region1: #{tpu_custom_call.1} parent=0
    #allocation2 [shape = 'u8[8192]{0}', space=vmem, size = 0x2000, scoped, tag = 'input window, operand 0']
    #allocation3 [shape = 's32[2]{0}', space=sflag, size = 0x8, scoped, tag = 'scoped memory for tpu_custom_call.1']
    #allocation4 [shape = 's32[2]{0}', space=sflag, size = 0x8, scoped, tag = 'scoped memory for tpu_custom_call.1']
    #allocation5 [shape = 'u8[8192]{0}', space=vmem, size = 0x2000, scoped, tag = 'input window, operand 1']
    #allocation6 [shape = 's32[2]{0}', space=sflag, size = 0x8, scoped, tag = 'scoped memory for tpu_custom_call.1']
    #allocation7 [shape = 'u8[8192]{0}', space=vmem, size = 0x2000, scoped, tag = 'input window, operand 2']
    #allocation8 [shape = 'u8[65536]{0}', space=vmem, size = 0x10000, scoped, tag = 'input window, operand 3, single buffered']
    #allocation9 [shape = 's32[1]{0}', space=sflag, size = 0x4, scoped, tag = 'scoped memory for tpu_custom_call.1']
    #allocation10 [shape = 'u8[24576]{0}', space=vmem, size = 0x6000, scoped, tag = 'output window, operand 0']
    %10 = vsyncpa [#allocation3], 0
    %s11 = scalar_lea.sflag [#allocation3], 1
    %12 = vsyncpa %s11, 0
    %13 = vsyncpa [#allocation6], 0
    %s14 = scalar_lea.sflag [#allocation6], 1
    %15 = vsyncpa %s14, 0
    %16 = vsyncpa [#allocation9], 0
    %17 = vsyncpa [#allocation4], 0
    %s18 = scalar_lea.sflag [#allocation4], 1
    %19 = vsyncpa %s18, 0
    loop: start=0, step=1, limit=4
    $region2: #{tpu_custom_call.1} parent=1 // loop_pre_header
      _
    $region3: #{tpu_custom_call.1} parent=1 // loop_header
      %s21 = sphi 0, %s25
      %p22 = scmp.ge.s32.totalorder %s21, 4
      %s31 = sphi 0, %s33
      %s34 = sphi 0, %s31
      %s35 = sphi 0, %s34
      %s51 = sphi 0, %s35
      %s57 = sphi 0, %s59
      %s60 = sphi 0, %s57
      %s61 = sphi 0, %s60
      %s77 = sphi 0, %s61
      %s83 = sphi 0, %s85
      %s86 = sphi 0, %s83
      %s87 = sphi 0, %s86
      %s103 = sphi 0, %s87
      %s107 = sphi 0, %s107
      %s109 = sphi 0, %s107
      %s110 = sphi 0, %s109
      %s124 = sphi 0, %s110
      %s128 = sphi 0, %s128
      %s130 = sphi 0, %s128
      %s131 = sphi 0, %s130
      %s145 = sphi 0, %s131
      %s151 = sphi 0, %s153
      %s154 = sphi 0, %s151
      %s155 = sphi 0, %s154
      %s171 = sphi 0, %s155
    $region4: #{tpu_custom_call.1} parent=1 // loop_header_branch
      %24 = sbr.rel (%p22) target = $region8
    $region5: #{tpu_custom_call.1} parent=1 // loop_body
      %s26 = ssub.s32 %s21, 1
      %s27 = ssub.s32 %s21, 2
      %s28 = sadd.s32 %s21, 1
      %s29 = ssub.s32 %s21, %s28
      %p30 = scmp.eq.s32.totalorder %s29, 0
      %s32 = sadd.s32 %s31, 1
      %s33 = scalar_select %p30, %s31, %s32
      %p36 = pneg %p30
      %p37 = scmp.eq.s32.totalorder %s21, 1
      %p38 = por %p36, %p37
      %p39 = scmp.ne.s32.totalorder %s31, %s34
      %p40 = scmp.eq.s32.totalorder %s21, 0
      %p41 = por %p39, %p40
      %p42 = scmp.ne.s32.totalorder %s31, %s34
      %p43 = scmp.eq.s32.totalorder %s26, 1
      %p44 = por %p42, %p43
      %p45 = scmp.ne.s32.totalorder %s34, %s35
      %p46 = scmp.eq.s32.totalorder %s26, 0
      %p47 = por %p45, %p46
      %p48 = scmp.ne.s32.totalorder %s34, %s35
      %p49 = scmp.eq.s32.totalorder %s27, 1
      %p50 = por %p48, %p49
      %p52 = scmp.ne.s32.totalorder %s35, %s51
      %p53 = scmp.eq.s32.totalorder %s27, 0
      %p54 = por %p52, %p53
      %s55 = ssub.s32 %s21, %s28
      %p56 = scmp.eq.s32.totalorder %s55, 0
      %s58 = sadd.s32 %s57, 1
      %s59 = scalar_select %p56, %s57, %s58
      %p62 = pneg %p56
      %p63 = scmp.eq.s32.totalorder %s21, 1
      %p64 = por %p62, %p63
      %p65 = scmp.ne.s32.totalorder %s57, %s60
      %p66 = scmp.eq.s32.totalorder %s21, 0
      %p67 = por %p65, %p66
      %p68 = scmp.ne.s32.totalorder %s57, %s60
      %p69 = scmp.eq.s32.totalorder %s26, 1
      %p70 = por %p68, %p69
      %p71 = scmp.ne.s32.totalorder %s60, %s61
      %p72 = scmp.eq.s32.totalorder %s26, 0
      %p73 = por %p71, %p72
      %p74 = scmp.ne.s32.totalorder %s60, %s61
      %p75 = scmp.eq.s32.totalorder %s27, 1
      %p76 = por %p74, %p75
      %p78 = scmp.ne.s32.totalorder %s61, %s77
      %p79 = scmp.eq.s32.totalorder %s27, 0
      %p80 = por %p78, %p79
      %s81 = ssub.s32 %s21, %s28
      %p82 = scmp.eq.s32.totalorder %s81, 0
      %s84 = sadd.s32 %s83, 1
      %s85 = scalar_select %p82, %s83, %s84
      %p88 = pneg %p82
      %p89 = scmp.eq.s32.totalorder %s21, 1
      %p90 = por %p88, %p89
      %p91 = scmp.ne.s32.totalorder %s83, %s86
      %p92 = scmp.eq.s32.totalorder %s21, 0
      %p93 = por %p91, %p92
      %p94 = scmp.ne.s32.totalorder %s83, %s86
      %p95 = scmp.eq.s32.totalorder %s26, 1
      %p96 = por %p94, %p95
      %p97 = scmp.ne.s32.totalorder %s86, %s87
      %p98 = scmp.eq.s32.totalorder %s26, 0
      %p99 = por %p97, %p98
      %p100 = scmp.ne.s32.totalorder %s86, %s87
      %p101 = scmp.eq.s32.totalorder %s27, 1
      %p102 = por %p100, %p101
      %p104 = scmp.ne.s32.totalorder %s87, %s103
      %p105 = scmp.eq.s32.totalorder %s27, 0
      %p106 = por %p104, %p105
      %s108 = sadd.s32 %s107, 1
      %p111 = scmp.eq.s32.totalorder %s21, 1
      %p112 = scmp.ne.s32.totalorder %s107, %s109
      %p113 = scmp.eq.s32.totalorder %s21, 0
      %p114 = por %p112, %p113
      %p115 = scmp.ne.s32.totalorder %s107, %s109
      %p116 = scmp.eq.s32.totalorder %s26, 1
      %p117 = por %p115, %p116
      %p118 = scmp.ne.s32.totalorder %s109, %s110
      %p119 = scmp.eq.s32.totalorder %s26, 0
      %p120 = por %p118, %p119
      %p121 = scmp.ne.s32.totalorder %s109, %s110
      %p122 = scmp.eq.s32.totalorder %s27, 1
      %p123 = por %p121, %p122
      %p125 = scmp.ne.s32.totalorder %s110, %s124
      %p126 = scmp.eq.s32.totalorder %s27, 0
      %p127 = por %p125, %p126
      %s129 = sadd.s32 %s128, 1
      %p132 = scmp.eq.s32.totalorder %s21, 1
      %p133 = scmp.ne.s32.totalorder %s128, %s130
      %p134 = scmp.eq.s32.totalorder %s21, 0
      %p135 = por %p133, %p134
      %p136 = scmp.ne.s32.totalorder %s128, %s130
      %p137 = scmp.eq.s32.totalorder %s26, 1
      %p138 = por %p136, %p137
      %p139 = scmp.ne.s32.totalorder %s130, %s131
      %p140 = scmp.eq.s32.totalorder %s26, 0
      %p141 = por %p139, %p140
      %p142 = scmp.ne.s32.totalorder %s130, %s131
      %p143 = scmp.eq.s32.totalorder %s27, 1
      %p144 = por %p142, %p143
      %p146 = scmp.ne.s32.totalorder %s131, %s145
      %p147 = scmp.eq.s32.totalorder %s27, 0
      %p148 = por %p146, %p147
      %s149 = ssub.s32 %s21, %s28
      %p150 = scmp.eq.s32.totalorder %s149, 0
      %s152 = sadd.s32 %s151, 1
      %s153 = scalar_select %p150, %s151, %s152
      %p156 = pneg %p150
      %p157 = scmp.eq.s32.totalorder %s21, 1
      %p158 = por %p156, %p157
      %p159 = scmp.ne.s32.totalorder %s151, %s154
      %p160 = scmp.eq.s32.totalorder %s21, 0
      %p161 = por %p159, %p160
      %p162 = scmp.ne.s32.totalorder %s151, %s154
      %p163 = scmp.eq.s32.totalorder %s26, 1
      %p164 = por %p162, %p163
      %p165 = scmp.ne.s32.totalorder %s154, %s155
      %p166 = scmp.eq.s32.totalorder %s26, 0
      %p167 = por %p165, %p166
      %p168 = scmp.ne.s32.totalorder %s154, %s155
      %p169 = scmp.eq.s32.totalorder %s27, 1
      %p170 = por %p168, %p169
      %p172 = scmp.ne.s32.totalorder %s155, %s171
      %p173 = scmp.eq.s32.totalorder %s27, 0
      %p174 = por %p172, %p173
      %p175 = scmp.le.s32.totalorder 1, %s21
      %p176 = scmp.lt.s32.totalorder %s21, 3
      %p177 = pnand %p175, %p176
      %p178 = pneg %p177
      // Predicated region
      $region9: #{tpu_custom_call.1} parent=5 // pred_check
        _
      $region10: #{tpu_custom_call.1} parent=5 // pred_check_branch
        %180 = sbr.rel (%p177) target = $region12
      $region11: #{tpu_custom_call.1} parent=5 // pred_region
        %s181 = ssub.s32 %s21, 1
        // Predicated region
        $region13: #{tpu_custom_call.1} parent=11 // pred_check
          %p182 = pneg %p120
        $region14: #{tpu_custom_call.1} parent=11 // pred_check_branch
          %184 = sbr.rel (%p182) target = $region16
        $region15: #{tpu_custom_call.1} parent=11 // pred_region
          %s186 = ssub.s32 2048, 2048
          %187 = vsyncadd [#allocation9], %s186
          %s188 = sshll.u32 [#allocation8], 4
          %s189 = int_to_ptr.vmem [resolvable:$true] %s188
          %194 = dma.hbm_to_vmem [thread:$0]  %s3, 2048, %s189, [#allocation9], 128, 128, 8
        $region16: #{tpu_custom_call.1} parent=11 // pred_fallthru
          _
        // Predicated region
        $region17: #{tpu_custom_call.1} parent=11 // pred_check
          %p195 = pneg %p141
        $region18: #{tpu_custom_call.1} parent=11 // pred_check_branch
          %197 = sbr.rel (%p195) target = $region20
        $region19: #{tpu_custom_call.1} parent=11 // pred_region
          _
        $region20: #{tpu_custom_call.1} parent=11 // pred_fallthru
          _
      $region12: #{tpu_custom_call.1} parent=5 // pred_fallthru
        _
      %p198 = scmp.lt.s32.totalorder %s21, 2
      // Predicated region
      $region21: #{tpu_custom_call.1} parent=5 // pred_check
        %p199 = pneg %p198
      $region22: #{tpu_custom_call.1} parent=5 // pred_check_branch
        %201 = sbr.rel (%p199) target = $region24
      $region23: #{tpu_custom_call.1} parent=5 // pred_region
        // Predicated region
        $region25: #{tpu_custom_call.1} parent=23 // pred_check
          %p202 = pneg %p41
        $region26: #{tpu_custom_call.1} parent=23 // pred_check_branch
          %204 = sbr.rel (%p202) target = $region28
        $region27: #{tpu_custom_call.1} parent=23 // pred_region
          %s205 = sand.u32 %s31, 1
          %s206 = scalar_lea.sflag [#allocation3], %s205
          %s207 = sand.u32 %s31, 1
          %s208 = smul.addr %s207, 8
          %s209 = scalar_lea.vmem [#allocation2], %s208
          %s211 = ssub.s32 128, 128
          %212 = vsyncadd %s206, %s211
          %s213 = smul.addr %s21, 128
          %s214 = scalar_lea.hbm %s0, %s213
          %s216 = sshll.u32 %s209, 4
          %s217 = int_to_ptr.vmem [resolvable:$true] %s216
          %219 = dma.hbm_to_vmem [thread:$0]  %s214, 128, %s217, %s206
        $region28: #{tpu_custom_call.1} parent=23 // pred_fallthru
          _
        // Predicated region
        $region29: #{tpu_custom_call.1} parent=23 // pred_check
          %p220 = pneg %p67
        $region30: #{tpu_custom_call.1} parent=23 // pred_check_branch
          %222 = sbr.rel (%p220) target = $region32
        $region31: #{tpu_custom_call.1} parent=23 // pred_region
          %s223 = sand.u32 %s21, 1
          %s224 = scalar_lea.sflag [#allocation6], %s223
          %s225 = sand.u32 %s57, 1
          %s226 = smul.addr %s225, 8
          %s227 = scalar_lea.vmem [#allocation5], %s226
          %s229 = ssub.s32 128, 128
          %230 = vsyncadd %s224, %s229
          %s231 = smul.addr %s21, 128
          %s232 = scalar_lea.hbm %s1, %s231
          %s234 = sshll.u32 %s227, 4
          %s235 = int_to_ptr.vmem [resolvable:$true] %s234
          %237 = dma.hbm_to_vmem [thread:$0]  %s232, 128, %s235, %s224
        $region32: #{tpu_custom_call.1} parent=23 // pred_fallthru
          _
        // Predicated region
        $region33: #{tpu_custom_call.1} parent=23 // pred_check
          %p238 = pneg %p93
        $region34: #{tpu_custom_call.1} parent=23 // pred_check_branch
          %240 = sbr.rel (%p238) target = $region36
        $region35: #{tpu_custom_call.1} parent=23 // pred_region
          %s241 = sand.u32 %s21, 1
          %s242 = scalar_lea.sflag [#allocation6], %s241
          %s243 = sand.u32 %s83, 1
          %s244 = smul.addr %s243, 8
          %s245 = scalar_lea.vmem [#allocation7], %s244
          %s247 = ssub.s32 128, 128
          %248 = vsyncadd %s242, %s247
          %s249 = smul.addr %s21, 128
          %s250 = scalar_lea.hbm %s2, %s249
          %s252 = sshll.u32 %s245, 4
          %s253 = int_to_ptr.vmem [resolvable:$true] %s252
          %255 = dma.hbm_to_vmem [thread:$0]  %s250, 128, %s253, %s242
        $region36: #{tpu_custom_call.1} parent=23 // pred_fallthru
          _
      $region24: #{tpu_custom_call.1} parent=5 // pred_fallthru
        _
      %p256 = scmp.le.s32.totalorder 1, %s21
      %p257 = scmp.lt.s32.totalorder %s21, 3
      %p258 = pnand %p256, %p257
      %p259 = pneg %p258
      // Predicated region
      $region37: #{tpu_custom_call.1} parent=5 // pred_check
        _
      $region38: #{tpu_custom_call.1} parent=5 // pred_check_branch
        %261 = sbr.rel (%p258) target = $region40
      $region39: #{tpu_custom_call.1} parent=5 // pred_region
        %s262 = ssub.s32 %s21, 1
        %s263 = sand.u32 %s34, 1
        %s264 = scalar_lea.sflag [#allocation3], %s263
        %s265 = sand.u32 %s34, 1
        %s266 = smul.addr %s265, 8
        %s267 = scalar_lea.vmem [#allocation2], %s266
        // Predicated region
        $region41: #{tpu_custom_call.1} parent=39 // pred_check
          %p268 = pneg %p47
        $region42: #{tpu_custom_call.1} parent=39 // pred_check_branch
          %270 = sbr.rel (%p268) target = $region44
        $region43: #{tpu_custom_call.1} parent=39 // pred_region
          %271 = dma.done %s264, 128
        $region44: #{tpu_custom_call.1} parent=39 // pred_fallthru
          _
        %s272 = sand.u32 %s26, 1
        %s273 = scalar_lea.sflag [#allocation6], %s272
        %s274 = sand.u32 %s60, 1
        %s275 = smul.addr %s274, 8
        %s276 = scalar_lea.vmem [#allocation5], %s275
        // Predicated region
        $region45: #{tpu_custom_call.1} parent=39 // pred_check
          %p277 = pneg %p73
        $region46: #{tpu_custom_call.1} parent=39 // pred_check_branch
          %279 = sbr.rel (%p277) target = $region48
        $region47: #{tpu_custom_call.1} parent=39 // pred_region
          %280 = dma.done %s273, 128
        $region48: #{tpu_custom_call.1} parent=39 // pred_fallthru
          _
        %s281 = sand.u32 %s26, 1
        %s282 = scalar_lea.sflag [#allocation6], %s281
        %s283 = sand.u32 %s86, 1
        %s284 = smul.addr %s283, 8
        %s285 = scalar_lea.vmem [#allocation7], %s284
        // Predicated region
        $region49: #{tpu_custom_call.1} parent=39 // pred_check
          %p286 = pneg %p99
        $region50: #{tpu_custom_call.1} parent=39 // pred_check_branch
          %288 = sbr.rel (%p286) target = $region52
        $region51: #{tpu_custom_call.1} parent=39 // pred_region
          %289 = dma.done %s282, 128
        $region52: #{tpu_custom_call.1} parent=39 // pred_fallthru
          _
        // Predicated region
        $region53: #{tpu_custom_call.1} parent=39 // pred_check
          %p290 = pneg %p120
        $region54: #{tpu_custom_call.1} parent=39 // pred_check_branch
          %292 = sbr.rel (%p290) target = $region56
        $region55: #{tpu_custom_call.1} parent=39 // pred_region
          %293 = dma.done [#allocation9], 2048
        $region56: #{tpu_custom_call.1} parent=39 // pred_fallthru
          _
        %s294 = sand.u32 %s34, 1
        %s295 = scalar_lea.sflag [#allocation3], %s294
        %s296 = sand.u32 %s34, 1
        %s297 = smul.addr %s296, 8
        %s298 = scalar_lea.vmem [#allocation2], %s297
        %p299 = pneg %p47
        %p300 = pneg %p44
        %s301 = sand.u32 %s26, 1
        %s302 = scalar_lea.sflag [#allocation6], %s301
        %s303 = sand.u32 %s60, 1
        %s304 = smul.addr %s303, 8
        %s305 = scalar_lea.vmem [#allocation5], %s304
        %p306 = pneg %p73
        %p307 = pneg %p70
        %s308 = sand.u32 %s26, 1
        %s309 = scalar_lea.sflag [#allocation6], %s308
        %s310 = sand.u32 %s86, 1
        %s311 = smul.addr %s310, 8
        %s312 = scalar_lea.vmem [#allocation7], %s311
        %p313 = pneg %p99
        %p314 = pneg %p96
        %p315 = pneg %p120
        %p316 = pneg %p117
        %p317 = pneg %p141
        %p318 = pneg %p138
        %p319 = pneg %p167
        %p320 = pneg %p164
        %s321 = sand.u32 %s154, 1
        %s322 = scalar_lea.sflag [#allocation4], %s321
        %s323 = sand.u32 %s154, 1
        %s324 = smul.addr %s323, 24
        %s325 = scalar_lea.vmem [#allocation10], %s324
        %v326 = vld [vmem:[#allocation8] sm:$0xff]
        %v327 = vld [vmem:[#allocation8 + $0x8] sm:$0xff]
        %v328 = vld [vmem:[#allocation8 + $0x10] sm:$0xff]
        %v329 = vld [vmem:[#allocation8 + $0x18] sm:$0xff]
        %v330 = vld [vmem:[#allocation8 + $0x20] sm:$0xff]
        %v331 = vld [vmem:[#allocation8 + $0x28] sm:$0xff]
        %v332 = vld [vmem:[#allocation8 + $0x30] sm:$0xff]
        %v333 = vld [vmem:[#allocation8 + $0x38] sm:$0xff]
        %v334 = vld [vmem:[#allocation8 + $0x40] sm:$0xff]
        %v335 = vld [vmem:[#allocation8 + $0x48] sm:$0xff]
        %v336 = vld [vmem:[#allocation8 + $0x50] sm:$0xff]
        %v337 = vld [vmem:[#allocation8 + $0x58] sm:$0xff]
        %v338 = vld [vmem:[#allocation8 + $0x60] sm:$0xff]
        %v339 = vld [vmem:[#allocation8 + $0x68] sm:$0xff]
        %v340 = vld [vmem:[#allocation8 + $0x70] sm:$0xff]
        %v341 = vld [vmem:[#allocation8 + $0x78] sm:$0xff]
        %v342 = vld [vmem:[%s4] sm:$0x1]
        %v343 = vld [vmem:[%s267] sm:$0xff]
        %v345 = vlaneseq
        %v346 = vshrl.u32 %v345, 7
        %v347 = vsub.s32 0, %v346
        %v348 = vrot.slane %v342, %v347
        %350 = vmatprep.subr.mxu0 0.0
        %351 = vmatpush1.msra.mxu0 %v341
        %352 = vmatprep.subr.mxu0 0.0
        %353 = vmatpush1.msra.mxu0 %v340
        %354 = vmatprep.subr.mxu0 0.0
        %355 = vmatpush1.msra.mxu0 %v339
        %356 = vmatprep.subr.mxu0 0.0
        %357 = vmatpush1.msra.mxu0 %v338
        %358 = vmatprep.subr.mxu0 0.0
        %359 = vmatpush1.msra.mxu0 %v337
        %360 = vmatprep.subr.mxu0 0.0
        %361 = vmatpush1.msra.mxu0 %v336
        %362 = vmatprep.subr.mxu0 0.0
        %363 = vmatpush1.msra.mxu0 %v335
        %364 = vmatprep.subr.mxu0 0.0
        %365 = vmatpush1.msra.mxu0 %v334
        %366 = vmatprep.subr.mxu0 0.0
        %367 = vmatpush1.msra.mxu0 %v333
        %368 = vmatprep.subr.mxu0 0.0
        %369 = vmatpush1.msra.mxu0 %v332
        %370 = vmatprep.subr.mxu0 0.0
        %371 = vmatpush1.msra.mxu0 %v331
        %372 = vmatprep.subr.mxu0 0.0
        %373 = vmatpush1.msra.mxu0 %v330
        %374 = vmatprep.subr.mxu0 0.0
        %375 = vmatpush1.msra.mxu0 %v329
        %376 = vmatprep.subr.mxu0 0.0
        %377 = vmatpush1.msra.mxu0 %v328
        %378 = vmatprep.subr.mxu0 0.0
        %379 = vmatpush1.msra.mxu0 %v327
        %380 = vmatprep.subr.mxu0 0.0
        %381 = vmatpush1.msra.mxu0 %v326
        %382 = vmatprep.subr.mxu0 0.0
        %383 = vmatpush2.msra.mxu0 0.0
        %384 = vmatprep.subr.mxu0 0.0
        %385 = vmatpush2.msra.mxu0 0.0
        %386 = vmatprep.subr.mxu0 0.0
        %387 = vmatpush2.msra.mxu0 0.0
        %388 = vmatprep.subr.mxu0 0.0
        %389 = vmatpush2.msra.mxu0 0.0
        %390 = vmatprep.subr.mxu0 0.0
        %391 = vmatpush2.msra.mxu0 0.0
        %392 = vmatprep.subr.mxu0 0.0
        %393 = vmatpush2.msra.mxu0 0.0
        %394 = vmatprep.subr.mxu0 0.0
        %395 = vmatpush2.msra.mxu0 0.0
        %396 = vmatprep.subr.mxu0 0.0
        %397 = vmatpush2.msra.mxu0 0.0
        %398 = vmatprep.subr.mxu0 0.0
        %399 = vmatpush2.msra.mxu0 0.0
        %400 = vmatprep.subr.mxu0 0.0
        %401 = vmatpush2.msra.mxu0 0.0
        %402 = vmatprep.subr.mxu0 0.0
        %403 = vmatpush2.msra.mxu0 0.0
        %404 = vmatprep.subr.mxu0 0.0
        %405 = vmatpush2.msra.mxu0 0.0
        %406 = vmatprep.subr.mxu0 0.0
        %407 = vmatpush2.msra.mxu0 0.0
        %408 = vmatprep.subr.mxu0 0.0
        %409 = vmatpush2.msra.mxu0 0.0
        %410 = vmatprep.subr.mxu0 0.0
        %411 = vmatpush2.msra.mxu0 0.0
        %412 = vmatprep.subr.mxu0 0.0
        %413 = vmatpush2.msra.mxu0 0.0
        %414 = vmatprep.mubr.f32.mxu0 0.0
        %415 = vmatmul.mubr.f32.gmra.mxu0 %v343
        %v416 = vpop.f32.mrf.mxu0
        %v417 = vadd.f32 %v348, %v416
        %v418 = vpop.f32.mrf.mxu0
        %419 = vdwg.mxu0
        %420 = vst [vmem:[%s325] sm:$0xff] %v417
        %v421 = vld [vmem:[%s276] sm:$0xff]
        %422 = vmatprep.subr.mxu0 0.0
        %423 = vmatpush1.msra.mxu0 %v341
        %424 = vmatprep.subr.mxu0 0.0
        %425 = vmatpush1.msra.mxu0 %v340
        %426 = vmatprep.subr.mxu0 0.0
        %427 = vmatpush1.msra.mxu0 %v339
        %428 = vmatprep.subr.mxu0 0.0
        %429 = vmatpush1.msra.mxu0 %v338
        %430 = vmatprep.subr.mxu0 0.0
        %431 = vmatpush1.msra.mxu0 %v337
        %432 = vmatprep.subr.mxu0 0.0
        %433 = vmatpush1.msra.mxu0 %v336
        %434 = vmatprep.subr.mxu0 0.0
        %435 = vmatpush1.msra.mxu0 %v335
        %436 = vmatprep.subr.mxu0 0.0
        %437 = vmatpush1.msra.mxu0 %v334
        %438 = vmatprep.subr.mxu0 0.0
        %439 = vmatpush1.msra.mxu0 %v333
        %440 = vmatprep.subr.mxu0 0.0
        %441 = vmatpush1.msra.mxu0 %v332
        %442 = vmatprep.subr.mxu0 0.0
        %443 = vmatpush1.msra.mxu0 %v331
        %444 = vmatprep.subr.mxu0 0.0
        %445 = vmatpush1.msra.mxu0 %v330
        %446 = vmatprep.subr.mxu0 0.0
        %447 = vmatpush1.msra.mxu0 %v329
        %448 = vmatprep.subr.mxu0 0.0
        %449 = vmatpush1.msra.mxu0 %v328
        %450 = vmatprep.subr.mxu0 0.0
        %451 = vmatpush1.msra.mxu0 %v327
        %452 = vmatprep.subr.mxu0 0.0
        %453 = vmatpush1.msra.mxu0 %v326
        %454 = vmatprep.subr.mxu0 0.0
        %455 = vmatpush2.msra.mxu0 0.0
        %456 = vmatprep.subr.mxu0 0.0
        %457 = vmatpush2.msra.mxu0 0.0
        %458 = vmatprep.subr.mxu0 0.0
        %459 = vmatpush2.msra.mxu0 0.0
        %460 = vmatprep.subr.mxu0 0.0
        %461 = vmatpush2.msra.mxu0 0.0
        %462 = vmatprep.subr.mxu0 0.0
        %463 = vmatpush2.msra.mxu0 0.0
        %464 = vmatprep.subr.mxu0 0.0
        %465 = vmatpush2.msra.mxu0 0.0
        %466 = vmatprep.subr.mxu0 0.0
        %467 = vmatpush2.msra.mxu0 0.0
        %468 = vmatprep.subr.mxu0 0.0
        %469 = vmatpush2.msra.mxu0 0.0
        %470 = vmatprep.subr.mxu0 0.0
        %471 = vmatpush2.msra.mxu0 0.0
        %472 = vmatprep.subr.mxu0 0.0
        %473 = vmatpush2.msra.mxu0 0.0
        %474 = vmatprep.subr.mxu0 0.0
        %475 = vmatpush2.msra.mxu0 0.0
        %476 = vmatprep.subr.mxu0 0.0
        %477 = vmatpush2.msra.mxu0 0.0
        %478 = vmatprep.subr.mxu0 0.0
        %479 = vmatpush2.msra.mxu0 0.0
        %480 = vmatprep.subr.mxu0 0.0
        %481 = vmatpush2.msra.mxu0 0.0
        %482 = vmatprep.subr.mxu0 0.0
        %483 = vmatpush2.msra.mxu0 0.0
        %484 = vmatprep.subr.mxu0 0.0
        %485 = vmatpush2.msra.mxu0 0.0
        %486 = vmatprep.mubr.f32.mxu0 0.0
        %487 = vmatmul.mubr.f32.gmra.mxu0 %v421
        %v488 = vpop.f32.mrf.mxu0
        %v489 = vadd.f32 %v348, %v488
        %v490 = vpop.f32.mrf.mxu0
        %491 = vdwg.mxu0
        %s492 = scalar_lea.vmem %s325, 8 [#allocation10]
        %493 = vst [vmem:[%s492] sm:$0xff] %v489
        %v494 = vld [vmem:[%s285] sm:$0xff]
        %495 = vmatprep.subr.mxu0 0.0
        %496 = vmatpush1.msra.mxu0 %v341
        %497 = vmatprep.subr.mxu0 0.0
        %498 = vmatpush1.msra.mxu0 %v340
        %499 = vmatprep.subr.mxu0 0.0
        %500 = vmatpush1.msra.mxu0 %v339
        %501 = vmatprep.subr.mxu0 0.0
        %502 = vmatpush1.msra.mxu0 %v338
        %503 = vmatprep.subr.mxu0 0.0
        %504 = vmatpush1.msra.mxu0 %v337
        %505 = vmatprep.subr.mxu0 0.0
        %506 = vmatpush1.msra.mxu0 %v336
        %507 = vmatprep.subr.mxu0 0.0
        %508 = vmatpush1.msra.mxu0 %v335
        %509 = vmatprep.subr.mxu0 0.0
        %510 = vmatpush1.msra.mxu0 %v334
        %511 = vmatprep.subr.mxu0 0.0
        %512 = vmatpush1.msra.mxu0 %v333
        %513 = vmatprep.subr.mxu0 0.0
        %514 = vmatpush1.msra.mxu0 %v332
        %515 = vmatprep.subr.mxu0 0.0
        %516 = vmatpush1.msra.mxu0 %v331
        %517 = vmatprep.subr.mxu0 0.0
        %518 = vmatpush1.msra.mxu0 %v330
        %519 = vmatprep.subr.mxu0 0.0
        %520 = vmatpush1.msra.mxu0 %v329
        %521 = vmatprep.subr.mxu0 0.0
        %522 = vmatpush1.msra.mxu0 %v328
        %523 = vmatprep.subr.mxu0 0.0
        %524 = vmatpush1.msra.mxu0 %v327
        %525 = vmatprep.subr.mxu0 0.0
        %526 = vmatpush1.msra.mxu0 %v326
        %527 = vmatprep.subr.mxu0 0.0
        %528 = vmatpush2.msra.mxu0 0.0
        %529 = vmatprep.subr.mxu0 0.0
        %530 = vmatpush2.msra.mxu0 0.0
        %531 = vmatprep.subr.mxu0 0.0
        %532 = vmatpush2.msra.mxu0 0.0
        %533 = vmatprep.subr.mxu0 0.0
        %534 = vmatpush2.msra.mxu0 0.0
        %535 = vmatprep.subr.mxu0 0.0
        %536 = vmatpush2.msra.mxu0 0.0
        %537 = vmatprep.subr.mxu0 0.0
        %538 = vmatpush2.msra.mxu0 0.0
        %539 = vmatprep.subr.mxu0 0.0
        %540 = vmatpush2.msra.mxu0 0.0
        %541 = vmatprep.subr.mxu0 0.0
        %542 = vmatpush2.msra.mxu0 0.0
        %543 = vmatprep.subr.mxu0 0.0
        %544 = vmatpush2.msra.mxu0 0.0
        %545 = vmatprep.subr.mxu0 0.0
        %546 = vmatpush2.msra.mxu0 0.0
        %547 = vmatprep.subr.mxu0 0.0
        %548 = vmatpush2.msra.mxu0 0.0
        %549 = vmatprep.subr.mxu0 0.0
        %550 = vmatpush2.msra.mxu0 0.0
        %551 = vmatprep.subr.mxu0 0.0
        %552 = vmatpush2.msra.mxu0 0.0
        %553 = vmatprep.subr.mxu0 0.0
        %554 = vmatpush2.msra.mxu0 0.0
        %555 = vmatprep.subr.mxu0 0.0
        %556 = vmatpush2.msra.mxu0 0.0
        %557 = vmatprep.subr.mxu0 0.0
        %558 = vmatpush2.msra.mxu0 0.0
        %559 = vmatprep.mubr.f32.mxu0 0.0
        %560 = vmatmul.mubr.f32.gmra.mxu0 %v494
        %v561 = vpop.f32.mrf.mxu0
        %v562 = vadd.f32 %v348, %v561
        %v563 = vpop.f32.mrf.mxu0
        %564 = vdwg.mxu0
        %s565 = scalar_lea.vmem %s325, 16 [#allocation10]
        %566 = vst [vmem:[%s565] sm:$0xff] %v562
        %s567 = sand.u32 %s154, 1
        %s568 = scalar_lea.sflag [#allocation4], %s567
        %s569 = sand.u32 %s154, 1
        %s570 = smul.addr %s569, 24
        %s571 = scalar_lea.vmem [#allocation10], %s570
        // Predicated region
        $region57: #{tpu_custom_call.1} parent=39 // pred_check
          %p572 = pneg %p164
        $region58: #{tpu_custom_call.1} parent=39 // pred_check_branch
          %574 = sbr.rel (%p572) target = $region60
        $region59: #{tpu_custom_call.1} parent=39 // pred_region
          %s576 = ssub.s32 384, 384
          %577 = vsyncadd %s568, %s576
          %s578 = smul.addr %s26, 128
          %s579 = scalar_lea.hbm %s5, %s578
          %s580 = sshll.u32 %s571, 4
          %s581 = int_to_ptr.vmem [resolvable:$true] %s580
          %586 = dma.vmem_to_hbm [thread:$0]  %s581, 384, %s579, %s568, 128, 256, 8
        $region60: #{tpu_custom_call.1} parent=39 // pred_fallthru
          _
      $region40: #{tpu_custom_call.1} parent=5 // pred_fallthru
        _
      %p587 = scmp.le.s32.totalorder 2, %s21
      // Predicated region
      $region61: #{tpu_custom_call.1} parent=5 // pred_check
        %p588 = pneg %p587
      $region62: #{tpu_custom_call.1} parent=5 // pred_check_branch
        %590 = sbr.rel (%p588) target = $region64
      $region63: #{tpu_custom_call.1} parent=5 // pred_region
        %s591 = ssub.s32 %s21, 2
        // Predicated region
        $region65: #{tpu_custom_call.1} parent=63 // pred_check
          %p592 = pneg %p170
        $region66: #{tpu_custom_call.1} parent=63 // pred_check_branch
          %594 = sbr.rel (%p592) target = $region68
        $region67: #{tpu_custom_call.1} parent=63 // pred_region
          %s595 = sand.u32 %s155, 1
          %s596 = scalar_lea.sflag [#allocation4], %s595
          %s597 = sand.u32 %s155, 1
          %s598 = smul.addr %s597, 24
          %s599 = scalar_lea.vmem [#allocation10], %s598
          %600 = dma.done %s596, 384
        $region68: #{tpu_custom_call.1} parent=63 // pred_fallthru
          _
      $region64: #{tpu_custom_call.1} parent=5 // pred_fallthru
        _
    $region6: #{tpu_custom_call.1} parent=1 // loop_footer
      %s25 = sadd.s32 1, %s21
    $region7: #{tpu_custom_call.1} parent=1 // loop_footer_branch
      %20 = sbr.rel target = $region3
    $region8: #{tpu_custom_call.1} parent=1 // loop_exit
      _
    %601 = vsyncpa [#allocation3], 1
    %s602 = scalar_lea.sflag [#allocation3], 1
    %603 = vsyncpa %s602, 1
    %604 = vsyncpa [#allocation6], 1
    %s605 = scalar_lea.sflag [#allocation6], 1
    %606 = vsyncpa %s605, 1
    %607 = vsyncpa [#allocation9], 1
    %608 = vsyncpa [#allocation4], 1
    %s609 = scalar_lea.sflag [#allocation4], 1
    %610 = vsyncpa %s609, 1

</llo_original>
